<compile_context>
chip_gen: v7x
topology: tpu7x:2x2x1
jax: 0.10.0
libtpu: 0.0.40
codegen_flags: <defaults>
</compile_context>

<pallas_src>
import jax
import jax.numpy as jnp
from jax.experimental import pallas as pl
from jax.experimental.pallas import tpu as pltpu

EPS = 1e-6


def _sublayer_connection_kernel(x_ref, gamma_ref, beta_ref, w_ref, b_ref,
                                o_ref, y_ref):
    # x_ref  : (tm, H)  full hidden rows (LayerNorm stats + residual source)
    # gamma_ref, beta_ref : (1, H) f32
    # w_ref  : (H, tn)  bf16 weight column tile
    # b_ref  : (1, tn)  f32 bias column tile
    # o_ref  : (tm, tn)
    # y_ref  : (tm, H)  bf16 VMEM scratch caching the normalized activations
    j = pl.program_id(1)
    tn = o_ref.shape[-1]
    H = x_ref.shape[-1]

    # --- custom LayerNorm, computed ONCE per row tile (j == 0) ---------------
    @pl.when(j == 0)
    def _():
        x = x_ref[...].astype(jnp.float32)
        gamma = gamma_ref[...].astype(jnp.float32)
        beta = beta_ref[...].astype(jnp.float32)
        mean = jnp.mean(x, axis=-1, keepdims=True)
        centered = x - mean
        # torch.std default is unbiased (ddof=1)
        var_unbiased = jnp.sum(centered * centered, axis=-1, keepdims=True) / (H - 1)
        std = jnp.sqrt(var_unbiased)
        inv = pl.reciprocal(std + EPS, approx=True)      # EUP slot, ~free
        y_ref[...] = ((centered * inv) * gamma + beta).astype(jnp.bfloat16)

    # --- sublayer: Linear column tile on the MXU, bf16 in / f32 accumulate ---
    bias = b_ref[...].astype(jnp.float32)
    h = jnp.dot(y_ref[...], w_ref[...], preferred_element_type=jnp.float32) + bias

    # --- dropout (eval mode -> identity) + residual ---------------------------
    # Residual columns are sliced from the already-resident x slab: no second
    # HBM read of x.
    if tn == H:                      # single column tile -> whole slab (static)
        resid = x_ref[...].astype(jnp.float32)
    else:
        off = j * tn
        if tn % 128 == 0:
            off = pl.multiple_of(off, 128)
        resid = x_ref[:, pl.ds(off, tn)].astype(jnp.float32)

    o_ref[...] = (resid + h).astype(o_ref.dtype)


def _pick_tile(dim, target, align, floor):
    """Largest multiple of `align` in [floor, target] dividing `dim`.

    Returns `dim` itself when dim <= target (a block equal to the full dim is
    always legal).  Returns None if no aligned divisor >= floor exists (caller
    should pad instead of accepting a degenerate tiny tile).
    """
    if dim <= target:
        return dim
    t = (target // align) * align
    while t >= floor:
        if dim % t == 0:
            return t
        t -= align
    return None


def _default_vmem_limit_bytes():
    """~3/4 of physical VMEM: 96 MiB on v5e/v6e (128 MiB), 48 MiB on v7x (64 MiB)."""
    try:
        cap = pltpu.get_tpu_info().vmem_capacity_bytes
        return min(int(cap * 3 // 4), 96 * 1024 * 1024)
    except Exception:
        return 48 * 1024 * 1024       # safe on every generation


def _block_vmem_bytes(tm, tn, H, x_bytes, out_bytes):
    """Rough per-step VMEM footprint of the double-buffered blocks + scratch."""
    return (2 * tm * H * x_bytes          # x slab (double-buffered)
            + 2 * H * tn * 2              # W tile, bf16 (double-buffered)
            + 2 * tm * tn * out_bytes     # output tile (double-buffered)
            + tm * H * 2                  # y scratch, bf16 (single buffer)
            + 2 * (2 * H + tn) * 4)       # gamma / beta / bias


def sublayer_connection(x, gamma, beta, w, b, *, tm=512, tn=512,
                        vmem_limit_bytes=None):
    """x: [B, S, H]; gamma, beta, b: [H]; w: [H, H] (residual needs same size).

    For best performance store `w` in bf16 at setup time (it is cast here only
    if needed, which otherwise adds an extra per-call pass over W).
    """
    B, S, H = x.shape
    N = w.shape[1]
    assert w.shape == (H, N) and N == H, "residual requires a square sublayer"
    M = B * S

    x2 = x.reshape(M, H)
    gamma2 = gamma.reshape(1, H).astype(jnp.float32)
    beta2 = beta.reshape(1, H).astype(jnp.float32)
    b2 = b.reshape(1, N).astype(jnp.float32)
    w_bf16 = w if w.dtype == jnp.bfloat16 else w.astype(jnp.bfloat16)

    if vmem_limit_bytes is None:
        vmem_limit_bytes = _default_vmem_limit_bytes()

    # Column tile: multiple of 128 (lane) dividing N; else one full-width tile.
    col_tile = _pick_tile(N, tn, 128, 128)
    if col_tile is None:
        col_tile = N

    # Row tile target: shrink until the double-buffered blocks fit the VMEM
    # budget (this caps tm on v7x's smaller VMEM; big tm on v5e/v6e cuts W
    # re-reads, the dominant HBM traffic).
    x_bytes = jnp.dtype(x.dtype).itemsize
    row_target = max(tm, 128)
    budget = int(vmem_limit_bytes * 0.75)
    while (row_target > 256 and
           _block_vmem_bytes(row_target, col_tile, H, x_bytes, x_bytes) > budget):
        row_target //= 2

    # Row tile: multiple of 8 (sublane) dividing M, floor 128; else pad rows.
    row_tile = _pick_tile(M, row_target, 8, 128)
    Mp = M
    if row_tile is None:
        # Pad rows so a clean, non-degenerate tile exists.  Padded (zero) rows
        # produce finite garbage (std=0 -> 1/eps, centered=0) and are dropped.
        Mp = ((M + row_target - 1) // row_target) * row_target
        x2 = jnp.pad(x2, ((0, Mp - M), (0, 0)))
        row_tile = row_target

    grid = (Mp // row_tile, N // col_tile)

    out = pl.pallas_call(
        _sublayer_connection_kernel,
        out_shape=jax.ShapeDtypeStruct((Mp, N), x.dtype),
        grid_spec=pltpu.PrefetchScalarGridSpec(
            num_scalar_prefetch=0,
            grid=grid,
            in_specs=[
                # Full-row x slab: LayerNorm stats + residual source; constant
                # across the inner column axis so it is DMA'd once per row tile.
                pl.BlockSpec((row_tile, H), lambda i, j: (i, 0)),
                pl.BlockSpec((1, H), lambda i, j: (0, 0)),          # gamma
                pl.BlockSpec((1, H), lambda i, j: (0, 0)),          # beta
                pl.BlockSpec((H, col_tile), lambda i, j: (0, j)),   # W columns
                pl.BlockSpec((1, col_tile), lambda i, j: (0, j)),   # bias cols
            ],
            out_specs=pl.BlockSpec((row_tile, col_tile), lambda i, j: (i, j)),
            scratch_shapes=[pltpu.VMEM((row_tile, H), jnp.bfloat16)],
        ),
        compiler_params=pltpu.CompilerParams(
            # j must stay sequential per core so the y scratch written at j==0
            # is valid for the remaining column tiles of the same row tile.
            dimension_semantics=("parallel", "arbitrary"),
            vmem_limit_bytes=vmem_limit_bytes,
        ),
    )(x2, gamma2, beta2, w_bf16, b2)

    if Mp != M:
        out = out[:M]
    return out.reshape(B, S, N)


def _reference(x, gamma, beta, w, b):
    xf = x.astype(jnp.float32)
    H = xf.shape[-1]
    mean = jnp.mean(xf, axis=-1, keepdims=True)
    c = xf - mean
    std = jnp.sqrt(jnp.sum(c * c, axis=-1, keepdims=True) / (H - 1))
    y = gamma * c / (std + EPS) + beta
    h = y @ w.astype(jnp.float32) + b
    return (xf + h).astype(x.dtype)


if __name__ == "__main__":
    B, S, H = 2, 8, 32
    key = jax.random.PRNGKey(0)
    kx, kw, kb = jax.random.split(key, 3)

    x = jax.random.normal(kx, (B, S, H), dtype=jnp.float32)

    # LayerNorm params as in __init__: a_2 = ones, b_2 = zeros
    gamma = jnp.ones((H,), dtype=jnp.float32)
    beta = jnp.zeros((H,), dtype=jnp.float32)

    # Deterministic sublayer (Linear H -> H) parameters.
    w = jax.random.normal(kw, (H, H), dtype=jnp.float32) * 0.05
    b = jax.random.normal(kb, (H,), dtype=jnp.float32) * 0.05

    # Pre-cast W to bf16 ONCE at setup (not per call) per the perf review.
    w_bf16 = w.astype(jnp.bfloat16)

    out = sublayer_connection(x, gamma, beta, w_bf16, b)
    out = jax.block_until_ready(out)

    ref = _reference(x, gamma, beta, w, b)
    assert out.shape == (B, S, H)
    # bf16 MXU operands + approx reciprocal vs. pure-f32 reference: error is
    # small and bounded at this H (f32 accumulation + f32 residual/norm math).
    assert jnp.allclose(out, ref, atol=1e-2, rtol=1e-2), "mismatch vs reference"

    print("KERNEL_OK")
</pallas_src>

<mosaic_0001>
module attributes {stable_mosaic.version = 11 : i64} {
  func.func @_sublayer_connection_kernel(%arg0: i32, %arg1: i32, %arg2: memref<16x32xf32, #tpu.memory_space<vmem>>, %arg3: memref<1x32xf32, #tpu.memory_space<vmem>>, %arg4: memref<1x32xf32, #tpu.memory_space<vmem>>, %arg5: memref<32x32xbf16, #tpu.memory_space<vmem>>, %arg6: memref<1x32xf32, #tpu.memory_space<vmem>>, %arg7: memref<16x32xf32, #tpu.memory_space<vmem>>, %arg8: memref<16x32xbf16, #tpu.memory_space<vmem>>) attributes {dimension_semantics = [#tpu.dimension_semantics<parallel>, #tpu.dimension_semantics<arbitrary>], iteration_bounds = array<i64: 1, 1>, scalar_prefetch = 0 : i64, scratch_operands = 1 : i64, tpu.core_type = #tpu.core_type<tc>, window_params = [{transform_indices = @transform_0, window_bounds = array<i64: 16, 32>}, {pipeline_mode = #tpu.pipeline_mode<synchronous>, transform_indices = @transform_1, window_bounds = array<i64: 1, 32>}, {pipeline_mode = #tpu.pipeline_mode<synchronous>, transform_indices = @transform_2, window_bounds = array<i64: 1, 32>}, {transform_indices = @transform_3, window_bounds = array<i64: 32, 32>}, {transform_indices = @transform_4, window_bounds = array<i64: 1, 32>}, {transform_indices = @transform_5, window_bounds = array<i64: 16, 32>}]} {
    %c0_i32 = arith.constant 0 : i32
    %0 = arith.cmpi eq, %arg1, %c0_i32 : i32
    %1 = arith.extui %0 : i1 to i32
    %c0_i32_0 = arith.constant 0 : i32
    %2 = arith.cmpi ne, %1, %c0_i32_0 : i32
    scf.if %2 {
      %c0_10 = arith.constant 0 : index
      %c0_11 = arith.constant 0 : index
      %12 = vector.load %arg2[%c0_10, %c0_11] : memref<16x32xf32, #tpu.memory_space<vmem>>, vector<16x32xf32>
      %c0_12 = arith.constant 0 : index
      %c0_13 = arith.constant 0 : index
      %13 = vector.load %arg3[%c0_12, %c0_13] : memref<1x32xf32, #tpu.memory_space<vmem>>, vector<1x32xf32>
      %c0_14 = arith.constant 0 : index
      %c0_15 = arith.constant 0 : index
      %14 = vector.load %arg4[%c0_14, %c0_15] : memref<1x32xf32, #tpu.memory_space<vmem>>, vector<1x32xf32>
      %cst_16 = arith.constant dense<0.000000e+00> : vector<16xf32>
      %15 = vector.multi_reduction <add>, %12, %cst_16 [1] : vector<16x32xf32> to vector<16xf32>
      %16 = vector.shape_cast %15 : vector<16xf32> to vector<16x1xf32>
      %cst_17 = arith.constant 3.200000e+01 : f32
      %17 = vector.broadcast %cst_17 : f32 to vector<16x1xf32>
      %18 = arith.divf %16, %17 : vector<16x1xf32>
      %19 = vector.broadcast %18 : vector<16x1xf32> to vector<16x32xf32>
      %20 = arith.subf %12, %19 : vector<16x32xf32>
      %21 = arith.mulf %20, %20 : vector<16x32xf32>
      %cst_18 = arith.constant dense<0.000000e+00> : vector<16xf32>
      %22 = vector.multi_reduction <add>, %21, %cst_18 [1] : vector<16x32xf32> to vector<16xf32>
      %23 = vector.shape_cast %22 : vector<16xf32> to vector<16x1xf32>
      %cst_19 = arith.constant 3.100000e+01 : f32
      %24 = vector.broadcast %cst_19 : f32 to vector<16x1xf32>
      %25 = arith.divf %23, %24 : vector<16x1xf32>
      %26 = math.sqrt %25 : vector<16x1xf32>
      %cst_20 = arith.constant 9.99999997E-7 : f32
      %27 = vector.broadcast %cst_20 : f32 to vector<16x1xf32>
      %28 = arith.addf %26, %27 : vector<16x1xf32>
      %29 = tpu.reciprocal %28 {approx = true} : vector<16x1xf32> -> vector<16x1xf32>
      %30 = vector.broadcast %29 : vector<16x1xf32> to vector<16x32xf32>
      %31 = arith.mulf %20, %30 : vector<16x32xf32>
      %32 = vector.broadcast %13 : vector<1x32xf32> to vector<16x32xf32>
      %33 = arith.mulf %31, %32 : vector<16x32xf32>
      %34 = vector.broadcast %14 : vector<1x32xf32> to vector<16x32xf32>
      %35 = arith.addf %33, %34 : vector<16x32xf32>
      %36 = arith.truncf %35 : vector<16x32xf32> to vector<16x32xbf16>
      %c0_21 = arith.constant 0 : index
      %c0_22 = arith.constant 0 : index
      %37 = vector.load %arg8[%c0_21, %c0_22] : memref<16x32xbf16, #tpu.memory_space<vmem>>, vector<16x32xbf16>
      tpu.vector_store %arg8[%c0_21, %c0_22], %36 {strides = array<i32>} : memref<16x32xbf16, #tpu.memory_space<vmem>>, vector<16x32xbf16>,
    } else {
    }
    %c0 = arith.constant 0 : index
    %c0_1 = arith.constant 0 : index
    %3 = vector.load %arg6[%c0, %c0_1] : memref<1x32xf32, #tpu.memory_space<vmem>>, vector<1x32xf32>
    %c0_2 = arith.constant 0 : index
    %c0_3 = arith.constant 0 : index
    %4 = vector.load %arg8[%c0_2, %c0_3] : memref<16x32xbf16, #tpu.memory_space<vmem>>, vector<16x32xbf16>
    %c0_4 = arith.constant 0 : index
    %c0_5 = arith.constant 0 : index
    %5 = vector.load %arg5[%c0_4, %c0_5] : memref<32x32xbf16, #tpu.memory_space<vmem>>, vector<32x32xbf16>
    %cst = arith.constant dense<0.000000e+00> : vector<16x32xf32>
    %6 = tpu.matmul %4, %5, %cst {dimension_numbers = #tpu.dot_dimension_numbers<[1], [0], [0], [1], [0, 0, 1, 1], [], []>} : vector<16x32xbf16>, vector<32x32xbf16>, vector<16x32xf32> -> vector<16x32xf32>
    %7 = vector.broadcast %3 : vector<1x32xf32> to vector<16x32xf32>
    %8 = arith.addf %6, %7 : vector<16x32xf32>
    %c0_6 = arith.constant 0 : index
    %c0_7 = arith.constant 0 : index
    %9 = vector.load %arg2[%c0_6, %c0_7] : memref<16x32xf32, #tpu.memory_space<vmem>>, vector<16x32xf32>
    %10 = arith.addf %9, %8 : vector<16x32xf32>
    %c0_8 = arith.constant 0 : index
    %c0_9 = arith.constant 0 : index
    %11 = vector.load %arg7[%c0_8, %c0_9] : memref<16x32xf32, #tpu.memory_space<vmem>>, vector<16x32xf32>
    tpu.vector_store %arg7[%c0_8, %c0_9], %10 {strides = array<i32>} : memref<16x32xf32, #tpu.memory_space<vmem>>, vector<16x32xf32>,
    return
  }
  func.func @transform_0(%arg0: i32, %arg1: i32) -> (i32, i32) {
    %c0_i32 = arith.constant 0 : i32
    %c0_i32_0 = arith.constant 0 : i32
    return %arg0, %c0_i32 : i32, i32
  }
  func.func @transform_1(%arg0: i32, %arg1: i32) -> (i32, i32) {
    %c0_i32 = arith.constant 0 : i32
    %c0_i32_0 = arith.constant 0 : i32
    %c0_i32_1 = arith.constant 0 : i32
    return %c0_i32, %c0_i32_0 : i32, i32
  }
  func.func @transform_2(%arg0: i32, %arg1: i32) -> (i32, i32) {
    %c0_i32 = arith.constant 0 : i32
    %c0_i32_0 = arith.constant 0 : i32
    %c0_i32_1 = arith.constant 0 : i32
    return %c0_i32, %c0_i32_0 : i32, i32
  }
  func.func @transform_3(%arg0: i32, %arg1: i32) -> (i32, i32) {
    %c0_i32 = arith.constant 0 : i32
    %c0_i32_0 = arith.constant 0 : i32
    return %c0_i32, %arg1 : i32, i32
  }
  func.func @transform_4(%arg0: i32, %arg1: i32) -> (i32, i32) {
    %c0_i32 = arith.constant 0 : i32
    %c0_i32_0 = arith.constant 0 : i32
    return %c0_i32, %arg1 : i32, i32
  }
  func.func @transform_5(%arg0: i32, %arg1: i32) -> (i32, i32) {
    %c0_i32 = arith.constant 0 : i32
    return %arg0, %arg1 : i32, i32
  }
}

</mosaic_0001>

<llo_original>
// kernel: tpu_custom_call.1
$region0: #{tpu_custom_call.1}
  #allocation0 [shape = 'u32[]', space=smem, size = 0x4, offset = 0x4, fixed_abs, tag = 'smem constant byte address 0x4 - core index']
  #allocation1 [shape = 'u32[144,128]{1,0:T(1,128)}', space=vmem, size = 0x12000, scoped, tag = 'internal scratch']
  #allocation2 [shape = 'bf16[16,32]{1,0:T(16,128)(2,1)}', space=vmem, size = 0x1000, scoped, tag = 'scratch operand']
  %s0 = inlined_call_operand.hbm [shape: f32[16,32], index: 0, kind: input, shape index: {}]
  %s1 = inlined_call_operand.vmem [shape: f32[1,32], index: 1, kind: input, shape index: {}]
  %s2 = inlined_call_operand.vmem [shape: f32[1,32], index: 2, kind: input, shape index: {}]
  %s3 = inlined_call_operand.hbm [shape: bf16[32,32], index: 3, kind: input, shape index: {}]
  %s4 = inlined_call_operand.vmem [shape: f32[1,32], index: 4, kind: input, shape index: {}]
  %s5 = inlined_call_operand.hbm [shape: f32[16,32], index: 5, kind: output, shape index: {}]
  %s6 = sld [smem:[#allocation0]]
  $region42: #{tpu_custom_call.1} parent=0
    _
  %s8 = ssub.s32 1, %s6
  %s9 = scalar_select 0, %s8, %s6
  $region1: #{tpu_custom_call.1} parent=0
    #allocation3 [shape = 'u8[8192]{0}', space=vmem, size = 0x2000, scoped, tag = 'input window, operand 0, single buffered']
    #allocation4 [shape = 's32[1]{0}', space=sflag, size = 0x4, scoped, tag = 'scoped memory for tpu_custom_call.1']
    #allocation5 [shape = 's32[1]{0}', space=sflag, size = 0x4, scoped, tag = 'scoped memory for tpu_custom_call.1']
    #allocation6 [shape = 'u8[8192]{0}', space=vmem, size = 0x2000, scoped, tag = 'input window, operand 3, single buffered']
    #allocation7 [shape = 's32[1]{0}', space=sflag, size = 0x4, scoped, tag = 'scoped memory for tpu_custom_call.1']
    #allocation8 [shape = 'u8[8192]{0}', space=vmem, size = 0x2000, scoped, tag = 'output window, operand 0, single buffered']
    %10 = vsyncpa [#allocation4], 0
    %11 = vsyncpa [#allocation7], 0
    %12 = vsyncpa [#allocation5], 0
    // Predicated region
    $region2: #{tpu_custom_call.1} parent=1 // pred_check
      _
    $region3: #{tpu_custom_call.1} parent=1 // pred_check_branch
      %14 = sbr.rel (0) target = $region5
    $region4: #{tpu_custom_call.1} parent=1 // pred_region
      %s16 = ssub.s32 256, 256
      %17 = vsyncadd [#allocation4], %s16
      %s18 = sshll.u32 [#allocation3], 4
      %s19 = int_to_ptr.vmem [resolvable:$true] %s18
      %24 = dma.hbm_to_vmem [thread:$0]  %s0, 256, %s19, [#allocation4], 128, 128, 8
    $region5: #{tpu_custom_call.1} parent=1 // pred_fallthru
      _
    // Predicated region
    $region6: #{tpu_custom_call.1} parent=1 // pred_check
      _
    $region7: #{tpu_custom_call.1} parent=1 // pred_check_branch
      %26 = sbr.rel (0) target = $region9
    $region8: #{tpu_custom_call.1} parent=1 // pred_region
      _
    $region9: #{tpu_custom_call.1} parent=1 // pred_fallthru
      _
    // Predicated region
    $region10: #{tpu_custom_call.1} parent=1 // pred_check
      _
    $region11: #{tpu_custom_call.1} parent=1 // pred_check_branch
      %28 = sbr.rel (0) target = $region13
    $region12: #{tpu_custom_call.1} parent=1 // pred_region
      _
    $region13: #{tpu_custom_call.1} parent=1 // pred_fallthru
      _
    // Predicated region
    $region14: #{tpu_custom_call.1} parent=1 // pred_check
      _
    $region15: #{tpu_custom_call.1} parent=1 // pred_check_branch
      %30 = sbr.rel (0) target = $region17
    $region16: #{tpu_custom_call.1} parent=1 // pred_region
      %s32 = ssub.s32 256, 256
      %33 = vsyncadd [#allocation7], %s32
      %s34 = sshll.u32 [#allocation6], 4
      %s35 = int_to_ptr.vmem [resolvable:$true] %s34
      %40 = dma.hbm_to_vmem [thread:$0]  %s3, 256, %s35, [#allocation7], 64, 64, 4
    $region17: #{tpu_custom_call.1} parent=1 // pred_fallthru
      _
    // Predicated region
    $region18: #{tpu_custom_call.1} parent=1 // pred_check
      _
    $region19: #{tpu_custom_call.1} parent=1 // pred_check_branch
      %42 = sbr.rel (0) target = $region21
    $region20: #{tpu_custom_call.1} parent=1 // pred_region
      _
    $region21: #{tpu_custom_call.1} parent=1 // pred_fallthru
      _
    // Predicated region
    $region22: #{tpu_custom_call.1} parent=1 // pred_check
      _
    $region23: #{tpu_custom_call.1} parent=1 // pred_check_branch
      %44 = sbr.rel (0) target = $region25
    $region24: #{tpu_custom_call.1} parent=1 // pred_region
      %45 = dma.done [#allocation4], 256
    $region25: #{tpu_custom_call.1} parent=1 // pred_fallthru
      _
    // Predicated region
    $region26: #{tpu_custom_call.1} parent=1 // pred_check
      _
    $region27: #{tpu_custom_call.1} parent=1 // pred_check_branch
      %47 = sbr.rel (0) target = $region29
    $region28: #{tpu_custom_call.1} parent=1 // pred_region
      %48 = dma.done [#allocation7], 256
    $region29: #{tpu_custom_call.1} parent=1 // pred_fallthru
      _
    %p50 = scmp.eq.s32.totalorder 0, 0
    // Predicated region
    $region30: #{tpu_custom_call.1} parent=1 // pred_check
      %p51 = pneg %p50
    $region31: #{tpu_custom_call.1} parent=1 // pred_check_branch
      %53 = sbr.rel (%p51) target = $region33
    $region32: #{tpu_custom_call.1} parent=1 // pred_region
      %v54 = vld [vmem:[#allocation3] sm:$0xff]
      %v55 = vld [vmem:[#allocation3 + $0x8] sm:$0xff]
      %v56 = vld [vmem:[%s1] sm:$0x1]
      %v57 = vld [vmem:[%s2] sm:$0x1]
      %vm58 = vcmask 261120
      %v59 = vsel %vm58, %v54, 0.0
      %60 = vadd.xlane.f32.xlu0 %v59
      %v61 = vpop.xlane.xlu0 %60
      %v62 = vsel %vm58, %v55, 0.0
      %63 = vadd.xlane.f32.xlu0 %v62
      %v64 = vpop.xlane.xlu0 %63
      %v65 = vrcp.pop 32.0
      %v66 = vmul.f32 %v61, %v65
      %v67 = vmul.f32 %v64, %v65
      %v68 = vsub.f32 %v54, %v66
      %v69 = vsub.f32 %v55, %v67
      %v70 = vmul.f32 %v68, %v68
      %v71 = vmul.f32 %v69, %v69
      %v72 = vsel %vm58, %v70, 0.0
      %73 = vadd.xlane.f32.xlu0 %v72
      %v74 = vpop.xlane.xlu0 %73
      %v75 = vsel %vm58, %v71, 0.0
      %76 = vadd.xlane.f32.xlu0 %v75
      %v77 = vpop.xlane.xlu0 %76
      %v78 = vrcp.pop 31.0
      %v79 = vmul.f32 %v74, %v78
      %v80 = vmul.f32 %v77, %v78
      %v81 = vrsqrt.pop %v79
      %v82 = vmul.f32 %v79, %v81
      %vm83 = vcmp.eq.f32.partialorder %v79, inf
      %v84 = vsel %vm83, %v79, %v82
      %vm85 = vcmp.eq.f32.partialorder %v79, 0.0
      %v86 = vand.u32 %v79, 2147483648
      %v87 = vsel %vm85, %v86, %v84
      %v88 = vrsqrt.pop %v80
      %v89 = vmul.f32 %v80, %v88
      %vm90 = vcmp.eq.f32.partialorder %v80, inf
      %v91 = vsel %vm90, %v80, %v89
      %vm92 = vcmp.eq.f32.partialorder %v80, 0.0
      %v93 = vand.u32 %v80, 2147483648
      %v94 = vsel %vm92, %v93, %v91
      %v95 = vadd.f32 %v87, 1e-06
      %v96 = vadd.f32 %v94, 1e-06
      %v97 = vrcp.pop %v95
      %v98 = vrcp.pop %v96
      %v99 = vmul.f32 %v68, %v97
      %v100 = vmul.f32 %v69, %v98
      %v102 = vlaneseq
      %v103 = vshrl.u32 %v102, 7
      %v104 = vsub.s32 0, %v103
      %v105 = vrot.slane %v56, %v104
      %v107 = vmul.f32 %v99, %v105
      %v108 = vmul.f32 %v100, %v105
      %v110 = vlaneseq
      %v111 = vshrl.u32 %v110, 7
      %v112 = vsub.s32 0, %v111
      %v113 = vrot.slane %v57, %v112
      %v115 = vadd.f32 %v107, %v113
      %v116 = vadd.f32 %v108, %v113
      %v117 = vpack.c.bf16 %v116, %v115
      %118 = vst.msk [vmem:[#allocation2] sm:$0xff] %vm58, %v117
    $region33: #{tpu_custom_call.1} parent=1 // pred_fallthru
      _
    %v119 = vld [vmem:[%s4] sm:$0x1]
    %v120 = vld [vmem:[#allocation2] sm:$0xff]
    %v121 = vld [vmem:[#allocation6] sm:$0xf]
    %v122 = vld [vmem:[#allocation6 + $0x4] sm:$0xf]
    %v123 = vld [vmem:[#allocation6 + $0x8] sm:$0xf]
    %v124 = vld [vmem:[#allocation6 + $0xc] sm:$0xf]
    %v126 = vlaneseq
    %v127 = vshrl.u32 %v126, 7
    %v128 = vsub.s32 0, %v127
    %v129 = vrot.slane %v119, %v128
    %v135 = vunpack.c.l.b16 %v121
    %v136 = vunpack.c.l.b16 %v122
    %v137 = vunpack.c.l.b16 %v123
    %v138 = vunpack.c.l.b16 %v124
    %v139 = vpack.c.b16 %v136, %v135
    %v140 = vpack.c.b16 %v138, %v137
    %vm143 = vcmask 261120
    %v145 = vsel %vm143, %v120, 0
    %147 = vmatprep.subr.bf16.mxu0 0
    %148 = vmatpush1.bf16.msra.mxu0 %v139
    %149 = vmatprep.subr.bf16.mxu0 0
    %150 = vmatpush1.bf16.msra.mxu0 %v140
    %151 = vmatprep.subr.bf16.mxu0 0
    %152 = vmatpush1.bf16.msra.mxu0 0
    %153 = vmatprep.subr.bf16.mxu0 0
    %154 = vmatpush1.bf16.msra.mxu0 0
    %155 = vmatprep.subr.bf16.mxu0 0
    %156 = vmatpush1.bf16.msra.mxu0 0
    %157 = vmatprep.subr.bf16.mxu0 0
    %158 = vmatpush1.bf16.msra.mxu0 0
    %159 = vmatprep.subr.bf16.mxu0 0
    %160 = vmatpush1.bf16.msra.mxu0 0
    %161 = vmatprep.subr.bf16.mxu0 0
    %162 = vmatpush1.bf16.msra.mxu0 0
    %163 = vmatprep.subr.bf16.mxu0 0
    %164 = vmatpush1.bf16.msra.mxu0 0
    %165 = vmatprep.subr.bf16.mxu0 0
    %166 = vmatpush1.bf16.msra.mxu0 0
    %167 = vmatprep.subr.bf16.mxu0 0
    %168 = vmatpush1.bf16.msra.mxu0 0
    %169 = vmatprep.subr.bf16.mxu0 0
    %170 = vmatpush1.bf16.msra.mxu0 0
    %171 = vmatprep.subr.bf16.mxu0 0
    %172 = vmatpush1.bf16.msra.mxu0 0
    %173 = vmatprep.subr.bf16.mxu0 0
    %174 = vmatpush1.bf16.msra.mxu0 0
    %175 = vmatprep.subr.bf16.mxu0 0
    %176 = vmatpush1.bf16.msra.mxu0 0
    %177 = vmatprep.subr.bf16.mxu0 0
    %178 = vmatpush1.bf16.msra.mxu0 0
    %179 = vmatprep.mubr.bf16.mxu0 0
    %180 = vmatmul.mubr.bf16.gmra.mrb[0].mxu0 %v145
    %v181 = vpop.f32.mrb[0].mxu0
    %v182 = vadd.f32 %v129, %v181
    %v183 = vpop.f32.mrb[0].mxu0
    %v184 = vpop.f32.mrb[0].mxu0
    %v185 = vadd.f32 %v129, %v184
    %v186 = vpop.f32.mrb[0].mxu0
    %187 = vdwg.mxu0
    %v188 = vld [vmem:[#allocation3] sm:$0xff]
    %v189 = vld [vmem:[#allocation3 + $0x8] sm:$0xff]
    %v190 = vadd.f32 %v188, %v182
    %v191 = vadd.f32 %v189, %v185
    %192 = vst.msk [vmem:[#allocation8] sm:$0xff] %vm143, %v190
    %193 = vst.msk [vmem:[#allocation8 + $0x8] sm:$0xff] %vm143, %v191
    // Predicated region
    $region34: #{tpu_custom_call.1} parent=1 // pred_check
      _
    $region35: #{tpu_custom_call.1} parent=1 // pred_check_branch
      %195 = sbr.rel (0) target = $region37
    $region36: #{tpu_custom_call.1} parent=1 // pred_region
      %s197 = ssub.s32 256, 256
      %198 = vsyncadd [#allocation5], %s197
      %s199 = sshll.u32 [#allocation8], 4
      %s200 = int_to_ptr.vmem [resolvable:$true] %s199
      %205 = dma.vmem_to_hbm [thread:$0]  %s200, 256, %s5, [#allocation5], 128, 128, 8
    $region37: #{tpu_custom_call.1} parent=1 // pred_fallthru
      _
    // Predicated region
    $region38: #{tpu_custom_call.1} parent=1 // pred_check
      _
    $region39: #{tpu_custom_call.1} parent=1 // pred_check_branch
      %207 = sbr.rel (0) target = $region41
    $region40: #{tpu_custom_call.1} parent=1 // pred_region
      %208 = dma.done [#allocation5], 256
    $region41: #{tpu_custom_call.1} parent=1 // pred_fallthru
      _
    %209 = vsyncpa [#allocation4], 1
    %210 = vsyncpa [#allocation7], 1
    %211 = vsyncpa [#allocation5], 1

</llo_original>
